<compile_context>
chip_gen: v7x
topology: tpu7x:2x2x1
jax: 0.10.0
libtpu: 0.0.40
codegen_flags: <defaults>
</compile_context>

<pallas_src>
import jax
import jax.numpy as jnp
from jax.experimental import pallas as pl
from jax.experimental.pallas import tpu as pltpu

EPS = 0.001


def _round_up(a, m):
    return (a + m - 1) // m * m


def exporter_kernel(x_ref, low_ref, dmin_ref, scale_ref, params_ref, out_ref):
    # x_ref      : (TB*C, T)  VMEM   features, batch-major / channel-minor rows
    # low_ref    : (TB,   T)  VMEM   lowres depth tile (reference)
    # dmin_ref   : (TB,   1)  VMEM   per-batch min(reference)      (pre-pass)
    # scale_ref  : (TB,   1)  VMEM   per-batch max-min, clamped at EPS
    # params_ref : (C+2,)     SMEM   [w'_0 .. w'_{C-1}, w_d, b']   (folded)
    # out_ref    : (TB,   T)  VMEM
    TB = low_ref.shape[0]
    C = x_ref.shape[0] // TB

    # Hoist all SMEM scalar reads (and the implied broadcasts) out of the loop.
    w = [params_ref[c] for c in range(C)]
    w_d = params_ref[C]
    b = params_ref[C + 1]

    def channel(c):
        if C == 1:
            return x_ref[...]
        # rows {c, c+C, ..., c+(TB-1)*C}: strided sublane slice, lane-dense.
        return x_ref[pl.ds(c, TB, stride=C), :]

    # Streaming per-channel multiply-accumulate (VPU); small live vreg set.
    head = w[0] * channel(0).astype(jnp.float32)
    for c in range(1, C):
        head = head + w[c] * channel(c).astype(jnp.float32)
    head = head + b

    low = low_ref[...].astype(jnp.float32)
    d_min = dmin_ref[...]                       # (TB, 1) broadcasts over lanes
    scale = scale_ref[...]

    # warp -> head -> unwarp with the HW-wide divide cancelled algebraically.
    out_ref[...] = (scale * head + w_d * (low - d_min) + d_min).astype(out_ref.dtype)


def jit_model_exporter_forward(x, lowres_depth, mean, std, w_x, w_d, b):
    """x: (B,C,H,W), lowres_depth: (B,1,H,W) -> (B,1,H,W) float32."""
    B, C, H, W = x.shape
    HW = H * W
    x_item = jnp.dtype(x.dtype).itemsize
    low_item = jnp.dtype(lowres_depth.dtype).itemsize

    # ---- parameter folding (O(C), once) ----
    mean_f = mean.reshape(-1).astype(jnp.float32)
    std_f = std.reshape(-1).astype(jnp.float32)
    w_fold = w_x.reshape(-1).astype(jnp.float32) / std_f               # w' = w/std
    b_fold = jnp.asarray(b, jnp.float32) - jnp.sum(w_fold * mean_f)    # b' = b - w'.mean
    params = jnp.concatenate(
        [w_fold, jnp.asarray(w_d, jnp.float32).reshape(1), b_fold.reshape(1)]
    ).astype(jnp.float32)                                              # (C + 2,)

    # ---- per-batch min/max pre-pass (tiny; only re-reads `low`) ----
    low2 = lowres_depth.reshape(B, HW)
    d_min = jnp.min(low2, axis=1, keepdims=True).astype(jnp.float32)
    d_max = jnp.max(low2, axis=1, keepdims=True).astype(jnp.float32)
    d_max = jnp.where(d_max - d_min < EPS, d_min + EPS, d_max)
    scale = d_max - d_min                                              # (B, 1)

    # ---- batch tiling: TB=8 (pad B) for large batches; TB=B for small ones ----
    if B >= 8:
        TB = 8
        B_pad = _round_up(B, TB)
    else:
        TB = B
        B_pad = B

    # ---- lane-dense layouts: x -> (B*C, HW), b-major/c-minor rows (free reshape) ----
    HW_pad = _round_up(HW, 128)
    x_flat = x.reshape(B * C, HW)
    low_flat = low2
    if HW_pad != HW:
        x_flat = jnp.pad(x_flat, ((0, 0), (0, HW_pad - HW)))
        low_flat = jnp.pad(low_flat, ((0, 0), (0, HW_pad - HW)))
    if B_pad != B:
        x_flat = jnp.pad(x_flat, ((0, (B_pad - B) * C), (0, 0)))
        low_flat = jnp.pad(low_flat, ((0, B_pad - B), (0, 0)))
        d_min = jnp.pad(d_min, ((0, B_pad - B), (0, 0)))
        scale = jnp.pad(scale, ((0, B_pad - B), (0, 0)), constant_values=1.0)

    # ---- VMEM budget per generation (v7x: 64MiB -> ~48MiB; v5e/v6e: 128 -> ~96) ----
    phys_vmem = 64 << 20
    try:
        info = pltpu.get_tpu_info()
        phys_vmem = int(getattr(info, "vmem_capacity_bytes", phys_vmem))
    except Exception:
        pass
    budget = (phys_vmem * 3) // 4

    x_rows = _round_up(TB * C, 8)      # sublane-padded rows actually held in VMEM
    lo_rows = _round_up(TB, 8)

    def blk_bytes(t):                  # double-buffered working set of one grid step
        per = t * (x_rows * x_item + lo_rows * low_item + lo_rows * 4)
        per += 2 * lo_rows * 128 * 4   # d_min / scale (lane-padded) blocks
        return 2 * per

    # Largest multiple of 128 dividing HW_pad, <= 2048 lanes, fitting the budget.
    k = max(1, min(2048, HW_pad) // 128)
    while k > 1 and (HW_pad % (k * 128) != 0 or blk_bytes(k * 128) > budget):
        k -= 1
    HW_tile = k * 128

    # v7x has two TensorCores: guarantee >= 2 grid steps on a parallel axis.
    if (B_pad // TB) * (HW_pad // HW_tile) < 2 and HW_pad >= 256:
        k = max(1, (HW_pad // 2) // 128)
        while k > 1 and HW_pad % (k * 128) != 0:
            k -= 1
        HW_tile = k * 128

    grid = (B_pad // TB, HW_pad // HW_tile)
    vmem_limit = int(min(budget, max(blk_bytes(HW_tile) + (4 << 20), 32 << 20)))

    cost = pl.CostEstimate(
        flops=int(B * HW * (2 * C + 6)),
        transcendentals=0,
        bytes_accessed=int(B * HW * (C * x_item + low_item + 4) + 4 * (C + 2)),
    )

    out_flat = pl.pallas_call(
        exporter_kernel,
        out_shape=jax.ShapeDtypeStruct((B_pad, HW_pad), jnp.float32),
        grid_spec=pltpu.PrefetchScalarGridSpec(
            num_scalar_prefetch=0,
            grid=grid,
            in_specs=[
                pl.BlockSpec((TB * C, HW_tile), lambda bi, hi: (bi, hi)),
                pl.BlockSpec((TB, HW_tile), lambda bi, hi: (bi, hi)),
                pl.BlockSpec((TB, 1), lambda bi, hi: (bi, 0)),
                pl.BlockSpec((TB, 1), lambda bi, hi: (bi, 0)),
                pl.BlockSpec(memory_space=pltpu.MemorySpace.SMEM),
            ],
            out_specs=pl.BlockSpec((TB, HW_tile), lambda bi, hi: (bi, hi)),
        ),
        compiler_params=pltpu.CompilerParams(
            dimension_semantics=("parallel", "parallel"),
            vmem_limit_bytes=vmem_limit,
        ),
        cost_estimate=cost,
    )(x_flat, low_flat, d_min, scale, params)

    return out_flat[:B, :HW].reshape(B, 1, H, W)


def reference_forward(x, lowres_depth, mean, std, w_x, w_d, b):
    """Pure-jnp reference with the same (unfolded) semantics as the PyTorch module."""
    B, C, H, W = x.shape
    ref_flat = lowres_depth.reshape(B, -1)
    d_min = ref_flat.min(axis=1, keepdims=True)
    d_max = ref_flat.max(axis=1, keepdims=True)
    d_max = jnp.where(d_max - d_min < EPS, d_min + EPS, d_max)
    scale = (d_max - d_min)[:, :, None, None]
    d_min_b = d_min[:, :, None, None]
    warped = (lowres_depth - d_min_b) / scale

    x_norm = (x - mean) / std
    depth = jnp.einsum("bchw,c->bhw", x_norm, w_x.reshape(-1))
    depth = depth + w_d * warped[:, 0] + b
    depth = depth[:, None]
    return depth * scale + d_min_b


if __name__ == "__main__":
    B, C, H, W = 2, 4, 16, 16

    key = jax.random.PRNGKey(0)
    kx, kl = jax.random.split(key)
    x = jax.random.normal(kx, (B, C, H, W), dtype=jnp.float32)
    lowres_depth = 0.5 + 2.5 * jax.random.uniform(kl, (B, 1, H, W), dtype=jnp.float32)

    # TODO(synk): the real depth_model is an opaque frozen torch network; it is
    # replaced here by a deterministic 1x1-conv + lowres-affine synthetic head.
    mean = (0.5 + 0.1 * jnp.arange(C, dtype=jnp.float32)).reshape(1, C, 1, 1)
    std = (0.25 + 0.05 * jnp.arange(C, dtype=jnp.float32)).reshape(1, C, 1, 1)
    w_x = jnp.linspace(-0.5, 0.5, C, dtype=jnp.float32)
    w_d = jnp.float32(0.3)
    b = jnp.float32(0.1)

    out = jit_model_exporter_forward(x, lowres_depth, mean, std, w_x, w_d, b)
    out = jax.block_until_ready(out)

    ref = reference_forward(x, lowres_depth, mean, std, w_x, w_d, b)
    assert out.shape == (B, 1, H, W)
    assert jnp.allclose(out, ref, atol=1e-4, rtol=1e-4)

    print("KERNEL_OK")
</pallas_src>

<mosaic_0001>
module attributes {stable_mosaic.version = 11 : i64} {
  func.func @exporter_kernel(%arg0: i32, %arg1: i32, %arg2: memref<8x128xf32, #tpu.memory_space<vmem>>, %arg3: memref<2x128xf32, #tpu.memory_space<vmem>>, %arg4: memref<2x1xf32, #tpu.memory_space<vmem>>, %arg5: memref<2x1xf32, #tpu.memory_space<vmem>>, %arg6: memref<6xf32, #tpu.memory_space<smem>>, %arg7: memref<2x128xf32, #tpu.memory_space<vmem>>) attributes {dimension_semantics = [#tpu.dimension_semantics<parallel>, #tpu.dimension_semantics<parallel>], iteration_bounds = array<i64: 1, 2>, scalar_prefetch = 0 : i64, scratch_operands = 0 : i64, tpu.core_type = #tpu.core_type<tc>, window_params = [{transform_indices = @transform_0, window_bounds = array<i64: 8, 128>}, {transform_indices = @transform_1, window_bounds = array<i64: 2, 128>}, {transform_indices = @transform_2, window_bounds = array<i64: 2, 1>}, {transform_indices = @transform_3, window_bounds = array<i64: 2, 1>}, {transform_indices = @transform_4, window_bounds = array<i64: 6>}, {transform_indices = @transform_5, window_bounds = array<i64: 2, 128>}]} {
    %c0 = arith.constant 0 : index
    %0 = memref.load %arg6[%c0] : memref<6xf32, #tpu.memory_space<smem>>
    %c1 = arith.constant 1 : index
    %1 = memref.load %arg6[%c1] : memref<6xf32, #tpu.memory_space<smem>>
    %c2 = arith.constant 2 : index
    %2 = memref.load %arg6[%c2] : memref<6xf32, #tpu.memory_space<smem>>
    %c3 = arith.constant 3 : index
    %3 = memref.load %arg6[%c3] : memref<6xf32, #tpu.memory_space<smem>>
    %c4 = arith.constant 4 : index
    %4 = memref.load %arg6[%c4] : memref<6xf32, #tpu.memory_space<smem>>
    %c5 = arith.constant 5 : index
    %5 = memref.load %arg6[%c5] : memref<6xf32, #tpu.memory_space<smem>>
    %c0_0 = arith.constant 0 : index
    %c0_1 = arith.constant 0 : index
    %6 = tpu.strided_load %arg2[%c0_0, %c0_1] {strides = array<i32: 4, 1>} : memref<8x128xf32, #tpu.memory_space<vmem>>, vector<2x128xf32>
    %7 = vector.broadcast %0 : f32 to vector<2x128xf32>
    %8 = arith.mulf %7, %6 : vector<2x128xf32>
    %c1_2 = arith.constant 1 : index
    %c0_3 = arith.constant 0 : index
    %9 = tpu.strided_load %arg2[%c1_2, %c0_3] {strides = array<i32: 4, 1>} : memref<8x128xf32, #tpu.memory_space<vmem>>, vector<2x128xf32>
    %10 = vector.broadcast %1 : f32 to vector<2x128xf32>
    %11 = arith.mulf %10, %9 : vector<2x128xf32>
    %12 = arith.addf %8, %11 : vector<2x128xf32>
    %c2_4 = arith.constant 2 : index
    %c0_5 = arith.constant 0 : index
    %13 = tpu.strided_load %arg2[%c2_4, %c0_5] {strides = array<i32: 4, 1>} : memref<8x128xf32, #tpu.memory_space<vmem>>, vector<2x128xf32>
    %14 = vector.broadcast %2 : f32 to vector<2x128xf32>
    %15 = arith.mulf %14, %13 : vector<2x128xf32>
    %16 = arith.addf %12, %15 : vector<2x128xf32>
    %c3_6 = arith.constant 3 : index
    %c0_7 = arith.constant 0 : index
    %17 = tpu.strided_load %arg2[%c3_6, %c0_7] {strides = array<i32: 4, 1>} : memref<8x128xf32, #tpu.memory_space<vmem>>, vector<2x128xf32>
    %18 = vector.broadcast %3 : f32 to vector<2x128xf32>
    %19 = arith.mulf %18, %17 : vector<2x128xf32>
    %20 = arith.addf %16, %19 : vector<2x128xf32>
    %21 = vector.broadcast %5 : f32 to vector<2x128xf32>
    %22 = arith.addf %20, %21 : vector<2x128xf32>
    %c0_8 = arith.constant 0 : index
    %c0_9 = arith.constant 0 : index
    %23 = vector.load %arg3[%c0_8, %c0_9] : memref<2x128xf32, #tpu.memory_space<vmem>>, vector<2x128xf32>
    %c0_10 = arith.constant 0 : index
    %c0_11 = arith.constant 0 : index
    %24 = vector.load %arg4[%c0_10, %c0_11] : memref<2x1xf32, #tpu.memory_space<vmem>>, vector<2x1xf32>
    %c0_12 = arith.constant 0 : index
    %c0_13 = arith.constant 0 : index
    %25 = vector.load %arg5[%c0_12, %c0_13] : memref<2x1xf32, #tpu.memory_space<vmem>>, vector<2x1xf32>
    %26 = vector.broadcast %25 : vector<2x1xf32> to vector<2x128xf32>
    %27 = arith.mulf %26, %22 : vector<2x128xf32>
    %28 = vector.broadcast %24 : vector<2x1xf32> to vector<2x128xf32>
    %29 = arith.subf %23, %28 : vector<2x128xf32>
    %30 = vector.broadcast %4 : f32 to vector<2x128xf32>
    %31 = arith.mulf %30, %29 : vector<2x128xf32>
    %32 = arith.addf %27, %31 : vector<2x128xf32>
    %33 = vector.broadcast %24 : vector<2x1xf32> to vector<2x128xf32>
    %34 = arith.addf %32, %33 : vector<2x128xf32>
    %c0_14 = arith.constant 0 : index
    %c0_15 = arith.constant 0 : index
    %35 = vector.load %arg7[%c0_14, %c0_15] : memref<2x128xf32, #tpu.memory_space<vmem>>, vector<2x128xf32>
    tpu.vector_store %arg7[%c0_14, %c0_15], %34 {strides = array<i32>} : memref<2x128xf32, #tpu.memory_space<vmem>>, vector<2x128xf32>,
    return
  }
  func.func @transform_0(%arg0: i32, %arg1: i32) -> (i32, i32) {
    %c0_i32 = arith.constant 0 : i32
    return %arg0, %arg1 : i32, i32
  }
  func.func @transform_1(%arg0: i32, %arg1: i32) -> (i32, i32) {
    %c0_i32 = arith.constant 0 : i32
    return %arg0, %arg1 : i32, i32
  }
  func.func @transform_2(%arg0: i32, %arg1: i32) -> (i32, i32) {
    %c0_i32 = arith.constant 0 : i32
    %c0_i32_0 = arith.constant 0 : i32
    return %arg0, %c0_i32 : i32, i32
  }
  func.func @transform_3(%arg0: i32, %arg1: i32) -> (i32, i32) {
    %c0_i32 = arith.constant 0 : i32
    %c0_i32_0 = arith.constant 0 : i32
    return %arg0, %c0_i32 : i32, i32
  }
  func.func @transform_4(%arg0: i32, %arg1: i32) -> i32 {
    %c0_i32 = arith.constant 0 : i32
    %c0_i32_0 = arith.constant 0 : i32
    return %c0_i32 : i32
  }
  func.func @transform_5(%arg0: i32, %arg1: i32) -> (i32, i32) {
    %c0_i32 = arith.constant 0 : i32
    return %arg0, %arg1 : i32, i32
  }
}

</mosaic_0001>

<llo_original>
// kernel: tpu_custom_call.1
$region0: #{tpu_custom_call.1}
  #allocation0 [shape = 'u32[]', space=smem, size = 0x4, offset = 0x4, fixed_abs, tag = 'smem constant byte address 0x4 - core index']
  #allocation1 [shape = 'u32[144,128]{1,0:T(1,128)}', space=vmem, size = 0x12000, scoped, tag = 'internal scratch']
  %s0 = inlined_call_operand.hbm [shape: f32[8,256], index: 0, kind: input, shape index: {}]
  %s1 = inlined_call_operand.vmem [shape: f32[2,256], index: 1, kind: input, shape index: {}]
  %s2 = inlined_call_operand.vmem [shape: f32[2,1], index: 2, kind: input, shape index: {}]
  %s3 = inlined_call_operand.vmem [shape: f32[2,1], index: 3, kind: input, shape index: {}]
  %s4 = inlined_call_operand.vmem [shape: f32[6], index: 4, kind: input, shape index: {}]
  %s5 = inlined_call_operand.hbm [shape: f32[2,256], index: 5, kind: output, shape index: {}]
  %s6 = sld [smem:[#allocation0]]
  $region61: #{tpu_custom_call.1} parent=0
    _
  %s8 = ssub.s32 1, %s6
  %s9 = scalar_select 0, %s8, %s6
  $region1: #{tpu_custom_call.1} parent=0
    #allocation2 [shape = 'u8[8192]{0}', space=vmem, size = 0x2000, scoped, tag = 'input window, operand 0']
    #allocation3 [shape = 's32[2]{0}', space=sflag, size = 0x8, scoped, tag = 'scoped memory for tpu_custom_call.1']
    #allocation4 [shape = 's32[2]{0}', space=sflag, size = 0x8, scoped, tag = 'scoped memory for tpu_custom_call.1']
    #allocation5 [shape = 's32[2]{0}', space=sflag, size = 0x8, scoped, tag = 'scoped memory for tpu_custom_call.1']
    #allocation6 [shape = 'u8[512]{0}', space=smem, size = 0x200, scoped, tag = 'input window, operand 4, single buffered']
    #allocation7 [shape = 'u8[2048]{0}', space=vmem, size = 0x800, scoped, tag = 'output window, operand 0']
    %10 = vsyncpa [#allocation3], 0
    %s11 = scalar_lea.sflag [#allocation3], 1
    %12 = vsyncpa %s11, 0
    %13 = vsyncpa [#allocation5], 0
    %14 = vsyncpa [#allocation4], 0
    %s15 = scalar_lea.sflag [#allocation4], 1
    %16 = vsyncpa %s15, 0
    loop: start=0, step=1, limit=4
    $region2: #{tpu_custom_call.1} parent=1 // loop_pre_header
      _
    $region3: #{tpu_custom_call.1} parent=1 // loop_header
      %s18 = sphi 0, %s22
      %p19 = scmp.ge.s32.totalorder %s18, 4
      %s25 = sphi 0, %s37
      %s26 = sphi 0, %s33
      %s27 = sphi 0, %s25
      %s28 = sphi 0, %s26
      %s29 = sphi 0, %s27
      %s30 = sphi 0, %s28
      %s42 = sphi 0, %s44
      %s45 = sphi 0, %s42
      %s46 = sphi 0, %s45
      %s62 = sphi 0, %s46
      %s70 = sphi 0, %s72
      %s73 = sphi 0, %s70
      %s74 = sphi 0, %s73
      %s90 = sphi 0, %s74
      %s96 = sphi 0, %s98
      %s99 = sphi 0, %s96
      %s100 = sphi 0, %s99
      %s116 = sphi 0, %s100
      %s122 = sphi 0, %s124
      %s125 = sphi 0, %s122
      %s126 = sphi 0, %s125
      %s142 = sphi 0, %s126
      %s146 = sphi 0, %s146
      %s148 = sphi 0, %s146
      %s149 = sphi 0, %s148
      %s163 = sphi 0, %s149
      %s171 = sphi 0, %s173
      %s174 = sphi 0, %s171
      %s175 = sphi 0, %s174
      %s191 = sphi 0, %s175
    $region4: #{tpu_custom_call.1} parent=1 // loop_header_branch
      %21 = sbr.rel (%p19) target = $region8
    $region5: #{tpu_custom_call.1} parent=1 // loop_body
      %s23 = ssub.s32 %s18, 1
      %s24 = ssub.s32 %s18, 2
      %s31 = sadd.s32 1, %s26
      %p32 = scmp.ge.s32.totalorder %s31, 2
      %s33 = scalar_select %p32, 0, %s31
      %s34 = sadd.s32 1, %s25
      %s35 = scalar_select %p32, %s34, %s25
      %p36 = scmp.ge.s32.totalorder %s35, 1
      %s37 = scalar_select %p36, 0, %s35
      %s38 = ssub.s32 %s25, %s37
      %s39 = ssub.s32 %s26, %s33
      %s40 = sor.u32 %s38, %s39
      %p41 = scmp.eq.s32.totalorder %s40, 0
      %s43 = sadd.s32 %s42, 1
      %s44 = scalar_select %p41, %s42, %s43
      %p47 = pneg %p41
      %p48 = scmp.eq.s32.totalorder %s18, 1
      %p49 = por %p47, %p48
      %p50 = scmp.ne.s32.totalorder %s42, %s45
      %p51 = scmp.eq.s32.totalorder %s18, 0
      %p52 = por %p50, %p51
      %p53 = scmp.ne.s32.totalorder %s42, %s45
      %p54 = scmp.eq.s32.totalorder %s23, 1
      %p55 = por %p53, %p54
      %p56 = scmp.ne.s32.totalorder %s45, %s46
      %p57 = scmp.eq.s32.totalorder %s23, 0
      %p58 = por %p56, %p57
      %p59 = scmp.ne.s32.totalorder %s45, %s46
      %p60 = scmp.eq.s32.totalorder %s24, 1
      %p61 = por %p59, %p60
      %p63 = scmp.ne.s32.totalorder %s46, %s62
      %p64 = scmp.eq.s32.totalorder %s24, 0
      %p65 = por %p63, %p64
      %s66 = ssub.s32 %s25, %s37
      %s67 = ssub.s32 %s26, %s33
      %s68 = sor.u32 %s66, %s67
      %p69 = scmp.eq.s32.totalorder %s68, 0
      %s71 = sadd.s32 %s70, 1
      %s72 = scalar_select %p69, %s70, %s71
      %p75 = pneg %p69
      %p76 = scmp.eq.s32.totalorder %s18, 1
      %p77 = por %p75, %p76
      %p78 = scmp.ne.s32.totalorder %s70, %s73
      %p79 = scmp.eq.s32.totalorder %s18, 0
      %p80 = por %p78, %p79
      %p81 = scmp.ne.s32.totalorder %s70, %s73
      %p82 = scmp.eq.s32.totalorder %s23, 1
      %p83 = por %p81, %p82
      %p84 = scmp.ne.s32.totalorder %s73, %s74
      %p85 = scmp.eq.s32.totalorder %s23, 0
      %p86 = por %p84, %p85
      %p87 = scmp.ne.s32.totalorder %s73, %s74
      %p88 = scmp.eq.s32.totalorder %s24, 1
      %p89 = por %p87, %p88
      %p91 = scmp.ne.s32.totalorder %s74, %s90
      %p92 = scmp.eq.s32.totalorder %s24, 0
      %p93 = por %p91, %p92
      %s94 = ssub.s32 %s25, %s37
      %p95 = scmp.eq.s32.totalorder %s94, 0
      %s97 = sadd.s32 %s96, 1
      %s98 = scalar_select %p95, %s96, %s97
      %p101 = pneg %p95
      %p102 = scmp.eq.s32.totalorder %s18, 1
      %p103 = por %p101, %p102
      %p104 = scmp.ne.s32.totalorder %s96, %s99
      %p105 = scmp.eq.s32.totalorder %s18, 0
      %p106 = por %p104, %p105
      %p107 = scmp.ne.s32.totalorder %s96, %s99
      %p108 = scmp.eq.s32.totalorder %s23, 1
      %p109 = por %p107, %p108
      %p110 = scmp.ne.s32.totalorder %s99, %s100
      %p111 = scmp.eq.s32.totalorder %s23, 0
      %p112 = por %p110, %p111
      %p113 = scmp.ne.s32.totalorder %s99, %s100
      %p114 = scmp.eq.s32.totalorder %s24, 1
      %p115 = por %p113, %p114
      %p117 = scmp.ne.s32.totalorder %s100, %s116
      %p118 = scmp.eq.s32.totalorder %s24, 0
      %p119 = por %p117, %p118
      %s120 = ssub.s32 %s25, %s37
      %p121 = scmp.eq.s32.totalorder %s120, 0
      %s123 = sadd.s32 %s122, 1
      %s124 = scalar_select %p121, %s122, %s123
      %p127 = pneg %p121
      %p128 = scmp.eq.s32.totalorder %s18, 1
      %p129 = por %p127, %p128
      %p130 = scmp.ne.s32.totalorder %s122, %s125
      %p131 = scmp.eq.s32.totalorder %s18, 0
      %p132 = por %p130, %p131
      %p133 = scmp.ne.s32.totalorder %s122, %s125
      %p134 = scmp.eq.s32.totalorder %s23, 1
      %p135 = por %p133, %p134
      %p136 = scmp.ne.s32.totalorder %s125, %s126
      %p137 = scmp.eq.s32.totalorder %s23, 0
      %p138 = por %p136, %p137
      %p139 = scmp.ne.s32.totalorder %s125, %s126
      %p140 = scmp.eq.s32.totalorder %s24, 1
      %p141 = por %p139, %p140
      %p143 = scmp.ne.s32.totalorder %s126, %s142
      %p144 = scmp.eq.s32.totalorder %s24, 0
      %p145 = por %p143, %p144
      %s147 = sadd.s32 %s146, 1
      %p150 = scmp.eq.s32.totalorder %s18, 1
      %p151 = scmp.ne.s32.totalorder %s146, %s148
      %p152 = scmp.eq.s32.totalorder %s18, 0
      %p153 = por %p151, %p152
      %p154 = scmp.ne.s32.totalorder %s146, %s148
      %p155 = scmp.eq.s32.totalorder %s23, 1
      %p156 = por %p154, %p155
      %p157 = scmp.ne.s32.totalorder %s148, %s149
      %p158 = scmp.eq.s32.totalorder %s23, 0
      %p159 = por %p157, %p158
      %p160 = scmp.ne.s32.totalorder %s148, %s149
      %p161 = scmp.eq.s32.totalorder %s24, 1
      %p162 = por %p160, %p161
      %p164 = scmp.ne.s32.totalorder %s149, %s163
      %p165 = scmp.eq.s32.totalorder %s24, 0
      %p166 = por %p164, %p165
      %s167 = ssub.s32 %s25, %s37
      %s168 = ssub.s32 %s26, %s33
      %s169 = sor.u32 %s167, %s168
      %p170 = scmp.eq.s32.totalorder %s169, 0
      %s172 = sadd.s32 %s171, 1
      %s173 = scalar_select %p170, %s171, %s172
      %p176 = pneg %p170
      %p177 = scmp.eq.s32.totalorder %s18, 1
      %p178 = por %p176, %p177
      %p179 = scmp.ne.s32.totalorder %s171, %s174
      %p180 = scmp.eq.s32.totalorder %s18, 0
      %p181 = por %p179, %p180
      %p182 = scmp.ne.s32.totalorder %s171, %s174
      %p183 = scmp.eq.s32.totalorder %s23, 1
      %p184 = por %p182, %p183
      %p185 = scmp.ne.s32.totalorder %s174, %s175
      %p186 = scmp.eq.s32.totalorder %s23, 0
      %p187 = por %p185, %p186
      %p188 = scmp.ne.s32.totalorder %s174, %s175
      %p189 = scmp.eq.s32.totalorder %s24, 1
      %p190 = por %p188, %p189
      %p192 = scmp.ne.s32.totalorder %s175, %s191
      %p193 = scmp.eq.s32.totalorder %s24, 0
      %p194 = por %p192, %p193
      %p195 = scmp.le.s32.totalorder 1, %s18
      %p196 = scmp.lt.s32.totalorder %s18, 3
      %p197 = pnand %p195, %p196
      %p198 = pneg %p197
      // Predicated region
      $region9: #{tpu_custom_call.1} parent=5 // pred_check
        _
      $region10: #{tpu_custom_call.1} parent=5 // pred_check_branch
        %200 = sbr.rel (%p197) target = $region12
      $region11: #{tpu_custom_call.1} parent=5 // pred_region
        %s201 = ssub.s32 %s18, 1
        // Predicated region
        $region13: #{tpu_custom_call.1} parent=11 // pred_check
          %p202 = pneg %p112
        $region14: #{tpu_custom_call.1} parent=11 // pred_check_branch
          %204 = sbr.rel (%p202) target = $region16
        $region15: #{tpu_custom_call.1} parent=11 // pred_region
          %p205 = scmp.lt.s32.totalorder %s27, 0
          %s206 = scalar_select %p205, %s27, 0
          %s207 = smul.addr %s206, 2
          %s208 = scalar_lea.vmem %s2, %s207
        $region16: #{tpu_custom_call.1} parent=11 // pred_fallthru
          _
        // Predicated region
        $region17: #{tpu_custom_call.1} parent=11 // pred_check
          %p209 = pneg %p138
        $region18: #{tpu_custom_call.1} parent=11 // pred_check_branch
          %211 = sbr.rel (%p209) target = $region20
        $region19: #{tpu_custom_call.1} parent=11 // pred_region
          %p212 = scmp.lt.s32.totalorder %s27, 0
          %s213 = scalar_select %p212, %s27, 0
          %s214 = smul.addr %s213, 2
          %s215 = scalar_lea.vmem %s3, %s214
        $region20: #{tpu_custom_call.1} parent=11 // pred_fallthru
          _
        // Predicated region
        $region21: #{tpu_custom_call.1} parent=11 // pred_check
          %p216 = pneg %p159
        $region22: #{tpu_custom_call.1} parent=11 // pred_check_branch
          %218 = sbr.rel (%p216) target = $region24
        $region23: #{tpu_custom_call.1} parent=11 // pred_region
          %s220 = ssub.s32 16, 16
          %221 = vsyncadd [#allocation5], %s220
          %s223 = sshll.u32 %s4, 4
          %s224 = int_to_ptr.vmem [resolvable:$true] %s223
          %226 = dma.vmem_to_smem %s224, 16, [#allocation6], [#allocation5]
        $region24: #{tpu_custom_call.1} parent=11 // pred_fallthru
          _
      $region12: #{tpu_custom_call.1} parent=5 // pred_fallthru
        _
      %p227 = scmp.lt.s32.totalorder %s18, 2
      // Predicated region
      $region25: #{tpu_custom_call.1} parent=5 // pred_check
        %p228 = pneg %p227
      $region26: #{tpu_custom_call.1} parent=5 // pred_check_branch
        %230 = sbr.rel (%p228) target = $region28
      $region27: #{tpu_custom_call.1} parent=5 // pred_region
        // Predicated region
        $region29: #{tpu_custom_call.1} parent=27 // pred_check
          %p231 = pneg %p52
        $region30: #{tpu_custom_call.1} parent=27 // pred_check_branch
          %233 = sbr.rel (%p231) target = $region32
        $region31: #{tpu_custom_call.1} parent=27 // pred_region
          %s234 = sand.u32 %s42, 1
          %s235 = scalar_lea.sflag [#allocation3], %s234
          %s236 = sand.u32 %s42, 1
          %s237 = smul.addr %s236, 8
          %s238 = scalar_lea.vmem [#allocation2], %s237
          %s240 = ssub.s32 128, 128
          %241 = vsyncadd %s235, %s240
          %s242 = smul.addr %s25, 2
          %s243 = sadd.s32 %s26, %s242
          %s244 = smul.addr %s243, 128
          %s245 = scalar_lea.hbm %s0, %s244
          %s247 = sshll.u32 %s238, 4
          %s248 = int_to_ptr.vmem [resolvable:$true] %s247
          %250 = dma.hbm_to_vmem [thread:$0]  %s245, 128, %s248, %s235
        $region32: #{tpu_custom_call.1} parent=27 // pred_fallthru
          _
        // Predicated region
        $region33: #{tpu_custom_call.1} parent=27 // pred_check
          %p251 = pneg %p80
        $region34: #{tpu_custom_call.1} parent=27 // pred_check_branch
          %253 = sbr.rel (%p251) target = $region36
        $region35: #{tpu_custom_call.1} parent=27 // pred_region
          %p254 = scmp.lt.s32.totalorder %s25, 0
          %s255 = scalar_select %p254, %s25, 0
          %p256 = scmp.lt.s32.totalorder %s26, 1
          %s257 = scalar_select %p256, %s26, 1
          %s258 = smul.addr %s255, 2
          %s259 = sadd.s32 %s257, %s258
          %s260 = smul.addr %s259, 2
          %s261 = scalar_lea.vmem %s1, %s260
        $region36: #{tpu_custom_call.1} parent=27 // pred_fallthru
          _
      $region28: #{tpu_custom_call.1} parent=5 // pred_fallthru
        _
      %p262 = scmp.le.s32.totalorder 1, %s18
      %p263 = scmp.lt.s32.totalorder %s18, 3
      %p264 = pnand %p262, %p263
      %p265 = pneg %p264
      // Predicated region
      $region37: #{tpu_custom_call.1} parent=5 // pred_check
        _
      $region38: #{tpu_custom_call.1} parent=5 // pred_check_branch
        %267 = sbr.rel (%p264) target = $region40
      $region39: #{tpu_custom_call.1} parent=5 // pred_region
        %s268 = ssub.s32 %s18, 1
        %s269 = sand.u32 %s45, 1
        %s270 = scalar_lea.sflag [#allocation3], %s269
        %s271 = sand.u32 %s45, 1
        %s272 = smul.addr %s271, 8
        %s273 = scalar_lea.vmem [#allocation2], %s272
        // Predicated region
        $region41: #{tpu_custom_call.1} parent=39 // pred_check
          %p274 = pneg %p58
        $region42: #{tpu_custom_call.1} parent=39 // pred_check_branch
          %276 = sbr.rel (%p274) target = $region44
        $region43: #{tpu_custom_call.1} parent=39 // pred_region
          %277 = dma.done %s270, 128
        $region44: #{tpu_custom_call.1} parent=39 // pred_fallthru
          _
        // Predicated region
        $region45: #{tpu_custom_call.1} parent=39 // pred_check
          %p278 = pneg %p159
        $region46: #{tpu_custom_call.1} parent=39 // pred_check_branch
          %280 = sbr.rel (%p278) target = $region48
        $region47: #{tpu_custom_call.1} parent=39 // pred_region
          %281 = dma.done [#allocation5], 16
        $region48: #{tpu_custom_call.1} parent=39 // pred_fallthru
          _
        %282 = sfence
        %s283 = sand.u32 %s45, 1
        %s284 = scalar_lea.sflag [#allocation3], %s283
        %s285 = sand.u32 %s45, 1
        %s286 = smul.addr %s285, 8
        %s287 = scalar_lea.vmem [#allocation2], %s286
        %p288 = pneg %p58
        %p289 = pneg %p55
        %p290 = scmp.lt.s32.totalorder %s27, 0
        %s291 = scalar_select %p290, %s27, 0
        %p292 = scmp.lt.s32.totalorder %s28, 1
        %s293 = scalar_select %p292, %s28, 1
        %s294 = smul.addr %s291, 2
        %s295 = sadd.s32 %s293, %s294
        %s296 = smul.addr %s295, 2
        %s297 = scalar_lea.vmem %s1, %s296
        %p298 = pneg %p86
        %p299 = pneg %p83
        %p300 = scmp.lt.s32.totalorder %s27, 0
        %s301 = scalar_select %p300, %s27, 0
        %s302 = smul.addr %s301, 2
        %s303 = scalar_lea.vmem %s2, %s302
        %p304 = pneg %p112
        %p305 = pneg %p109
        %p306 = scmp.lt.s32.totalorder %s27, 0
        %s307 = scalar_select %p306, %s27, 0
        %s308 = smul.addr %s307, 2
        %s309 = scalar_lea.vmem %s3, %s308
        %p310 = pneg %p138
        %p311 = pneg %p135
        %p312 = pneg %p159
        %p313 = pneg %p156
        %p314 = pneg %p187
        %p315 = pneg %p184
        %s316 = sand.u32 %s174, 1
        %s317 = scalar_lea.sflag [#allocation4], %s316
        %s318 = sand.u32 %s174, 1
        %s319 = smul.addr %s318, 2
        %s320 = scalar_lea.vmem [#allocation7], %s319
        %p321 = scmp.lt.s32.totalorder %s27, 0
        %s322 = scalar_select %p321, %s27, 0
        %p323 = scmp.lt.s32.totalorder %s28, 1
        %s324 = scalar_select %p323, %s28, 1
        %s325 = smul.addr %s322, 2
        %s326 = sadd.s32 %s324, %s325
        %s327 = smul.addr %s326, 2
        %s328 = scalar_lea.vmem %s1, %s327
        %p329 = scmp.lt.s32.totalorder %s27, 0
        %s330 = scalar_select %p329, %s27, 0
        %s331 = smul.addr %s330, 2
        %s332 = scalar_lea.vmem %s2, %s331
        %p333 = scmp.lt.s32.totalorder %s27, 0
        %s334 = scalar_select %p333, %s27, 0
        %s335 = smul.addr %s334, 2
        %s336 = scalar_lea.vmem %s3, %s335
        %s337 = sld [smem:[#allocation6]]
        %s338 = sld [smem:[#allocation6 + $0x1]]
        %s339 = sld [smem:[#allocation6 + $0x2]]
        %s340 = sld [smem:[#allocation6 + $0x3]]
        %s341 = sld [smem:[#allocation6 + $0x4]]
        %s342 = sld [smem:[#allocation6 + $0x5]]
        %v343 = vld [vmem:[%s273] ss:$4 sm:$0x3]
        %v344 = vstv %s337
        %v345 = vmul.f32 %v344, %v343
        %s346 = scalar_lea.vmem %s273, 1 [#allocation2]
        %v347 = vld [vmem:[%s346] ss:$4 sm:$0x3]
        %v348 = vstv %s338
        %v349 = vmul.f32 %v348, %v347
        %v350 = vadd.f32 %v345, %v349
        %s351 = scalar_lea.vmem %s273, 2 [#allocation2]
        %v352 = vld [vmem:[%s351] ss:$4 sm:$0x3]
        %v353 = vstv %s339
        %v354 = vmul.f32 %v353, %v352
        %v355 = vadd.f32 %v350, %v354
        %s356 = scalar_lea.vmem %s273, 3 [#allocation2]
        %v357 = vld [vmem:[%s356] ss:$4 sm:$0x3]
        %v358 = vstv %s340
        %v359 = vmul.f32 %v358, %v357
        %v360 = vadd.f32 %v355, %v359
        %v361 = vstv %s342
        %v362 = vadd.f32 %v360, %v361
        %v363 = vld [vmem:[%s328] sm:$0x3]
        %v364 = vld [vmem:[%s332] sm:$0x3]
        %v365 = vld [vmem:[%s336] sm:$0x3]
        %367 = vset.pattern.permute.xlu0 0
        %368 = vperm.xlu0 %367, %v365
        %v369 = vpop.permute.xlu0 %368
        %v371 = vmul.f32 %v369, %v362
        %373 = vset.pattern.permute.xlu0 0
        %374 = vperm.xlu0 %373, %v364
        %v375 = vpop.permute.xlu0 %374
        %v377 = vsub.f32 %v363, %v375
        %v378 = vstv %s341
        %v379 = vmul.f32 %v378, %v377
        %v380 = vadd.f32 %v371, %v379
        %v381 = vadd.f32 %v380, %v375
        %382 = vst [vmem:[%s320] sm:$0x3] %v381
        %s383 = sand.u32 %s174, 1
        %s384 = scalar_lea.sflag [#allocation4], %s383
        %s385 = sand.u32 %s174, 1
        %s386 = smul.addr %s385, 2
        %s387 = scalar_lea.vmem [#allocation7], %s386
        // Predicated region
        $region49: #{tpu_custom_call.1} parent=39 // pred_check
          %p388 = pneg %p184
        $region50: #{tpu_custom_call.1} parent=39 // pred_check_branch
          %390 = sbr.rel (%p388) target = $region52
        $region51: #{tpu_custom_call.1} parent=39 // pred_region
          %s392 = ssub.s32 32, 32
          %393 = vsyncadd %s384, %s392
          %s394 = smul.addr %s27, 2
          %s395 = sadd.s32 %s28, %s394
          %s396 = smul.addr %s395, 32
          %s397 = scalar_lea.hbm %s5, %s396
          %s399 = sshll.u32 %s387, 4
          %s400 = int_to_ptr.vmem [resolvable:$true] %s399
          %402 = dma.vmem_to_hbm [thread:$0]  %s400, 32, %s397, %s384
        $region52: #{tpu_custom_call.1} parent=39 // pred_fallthru
          _
      $region40: #{tpu_custom_call.1} parent=5 // pred_fallthru
        _
      %p403 = scmp.le.s32.totalorder 2, %s18
      // Predicated region
      $region53: #{tpu_custom_call.1} parent=5 // pred_check
        %p404 = pneg %p403
      $region54: #{tpu_custom_call.1} parent=5 // pred_check_branch
        %406 = sbr.rel (%p404) target = $region56
      $region55: #{tpu_custom_call.1} parent=5 // pred_region
        %s407 = ssub.s32 %s18, 2
        // Predicated region
        $region57: #{tpu_custom_call.1} parent=55 // pred_check
          %p408 = pneg %p190
        $region58: #{tpu_custom_call.1} parent=55 // pred_check_branch
          %410 = sbr.rel (%p408) target = $region60
        $region59: #{tpu_custom_call.1} parent=55 // pred_region
          %s411 = sand.u32 %s175, 1
          %s412 = scalar_lea.sflag [#allocation4], %s411
          %s413 = sand.u32 %s175, 1
          %s414 = smul.addr %s413, 2
          %s415 = scalar_lea.vmem [#allocation7], %s414
          %416 = dma.done %s412, 32
        $region60: #{tpu_custom_call.1} parent=55 // pred_fallthru
          _
      $region56: #{tpu_custom_call.1} parent=5 // pred_fallthru
        _
    $region6: #{tpu_custom_call.1} parent=1 // loop_footer
      %s22 = sadd.s32 1, %s18
    $region7: #{tpu_custom_call.1} parent=1 // loop_footer_branch
      %17 = sbr.rel target = $region3
    $region8: #{tpu_custom_call.1} parent=1 // loop_exit
      _
    %417 = vsyncpa [#allocation3], 1
    %s418 = scalar_lea.sflag [#allocation3], 1
    %419 = vsyncpa %s418, 1
    %420 = vsyncpa [#allocation4], 1
    %s421 = scalar_lea.sflag [#allocation4], 1
    %422 = vsyncpa %s421, 1
    %423 = vsyncpa [#allocation5], 1
    %s424 = scalar_lea.sflag [#allocation5], 1
    %425 = vsyncpa %s424, 1

</llo_original>
